<compile_context>
chip_gen: v5e
topology: v5e:2x2
jax: 0.10.0
libtpu: 0.0.40
codegen_flags: <defaults>
</compile_context>

<pallas_src>
import math
import functools

import jax
import jax.numpy as jnp
from jax.experimental import pallas as pl
from jax.experimental.pallas import tpu as pltpu


# ----------------------------------------------------------------------------
# helpers
# ----------------------------------------------------------------------------

def _round_up(x, m):
    return (x + m - 1) // m * m


@functools.lru_cache(maxsize=None)
def _vmem_limit_bytes():
    """Per-generation VMEM budget: ~85% of physical, capped at 112 MiB.

    v7x (64 MiB/TC)  -> ~54 MiB      v5e/v6e (128 MiB) -> ~109 -> 112 MiB cap.
    Falls back to a conservative 48 MiB if the query fails.
    """
    try:
        cap = int(pltpu.get_tpu_info().vmem_capacity_bytes)
    except Exception:
        cap = 0
    if cap <= 0:
        return 48 * 1024 * 1024
    return min(int(cap * 0.85), 112 * 1024 * 1024)


def _pick_row_tile(m, target, align):
    """Full (align-rounded) extent for small M, `target` (mult. of 128) else."""
    if m <= target:
        return _round_up(m, align)
    return target


def _invariant_spec(shape, grid_ndim):
    """BlockSpec for a grid-invariant input (weights / biases / LN params):
    same block every grid step, single-buffered (no wasted second copy)."""
    n = len(shape)
    if grid_ndim == 1:
        idx = lambda i, _n=n: (0,) * _n
    else:
        idx = lambda b, i, _n=n: (0,) * _n
    return pl.BlockSpec(shape, idx, pipeline_mode=pl.Buffered(1))


# ----------------------------------------------------------------------------
# Kernel 1: row-tiled linear (used for the fused K|V projection)
# ----------------------------------------------------------------------------

def _linear_kernel(x_ref, w_ref, b_ref, o_ref, *, relu, matmul_dtype):
    x = x_ref[...].astype(matmul_dtype)
    w = w_ref[...].astype(matmul_dtype)
    y = jnp.dot(x, w, preferred_element_type=jnp.float32)
    y = y + b_ref[...].astype(jnp.float32)
    if relu:
        y = jnp.maximum(y, 0.0)
    o_ref[...] = y.astype(o_ref.dtype)


def linear(x2d, w, b, *, relu=False, row_tile=256, align=16,
           matmul_dtype=jnp.bfloat16, out_dtype=None, vmem_limit=None):
    """y = x @ w + b over (M, Din) rows with large row tiles + padding."""
    m, d_in = x2d.shape
    d_out = w.shape[1]
    out_dtype = x2d.dtype if out_dtype is None else out_dtype
    vmem_limit = _vmem_limit_bytes() if vmem_limit is None else vmem_limit

    tm = _pick_row_tile(m, row_tile, align)
    m_pad = _round_up(m, tm)
    xp = x2d if m_pad == m else jnp.pad(x2d, ((0, m_pad - m), (0, 0)))

    kernel = functools.partial(_linear_kernel, relu=relu, matmul_dtype=matmul_dtype)
    out = pl.pallas_call(
        kernel,
        out_shape=jax.ShapeDtypeStruct((m_pad, d_out), out_dtype),
        grid=(m_pad // tm,),
        in_specs=[
            pl.BlockSpec((tm, d_in), lambda i: (i, 0)),
            _invariant_spec((d_in, d_out), 1),      # weight (single-buffered)
            _invariant_spec((1, d_out), 1),         # bias   (single-buffered)
        ],
        out_specs=pl.BlockSpec((tm, d_out), lambda i: (i, 0)),
        compiler_params=pltpu.CompilerParams(
            dimension_semantics=("parallel",),
            vmem_limit_bytes=vmem_limit),
    )(xp, w, b.reshape(1, d_out))
    return out if m_pad == m else out[:m]


# ----------------------------------------------------------------------------
# Kernel 2: fully fused cross-attention block
#   (Q proj -> all-heads attention -> out proj -> +res -> LN1
#    -> MLP (2 linears, ReLU) -> +res -> LN2)
# ----------------------------------------------------------------------------

def _layernorm_f32(x, g, b, eps):
    mu = jnp.mean(x, axis=-1, keepdims=True)
    xc = x - mu
    var = jnp.mean(xc * xc, axis=-1, keepdims=True)
    return xc * jax.lax.rsqrt(var + eps) * g + b


def _cross_block_kernel(q_ref, kv_ref,
                        wq_ref, bq_ref, wo_ref, bo_ref,
                        g1_ref, be1_ref,
                        w1_ref, bb1_ref, w2_ref, bb2_ref,
                        g2_ref, be2_ref,
                        o_ref,
                        ctx_ref,
                        *, num_heads, scale, eps, matmul_dtype):
    x_in = q_ref[0].astype(jnp.float32)                     # (tq, D) f32 residual/LN
    D = x_in.shape[-1]
    hd = D // num_heads

    # ---- fused Q projection; fold 1/sqrt(hd) into q ----
    q = jnp.dot(x_in.astype(matmul_dtype), wq_ref[...].astype(matmul_dtype),
                preferred_element_type=jnp.float32)
    q = (q + bq_ref[...].astype(jnp.float32)) * scale

    kv = kv_ref[0]                                          # (Lk, 2D), matmul_dtype
    k = kv[:, :D].astype(matmul_dtype)
    v = kv[:, D:].astype(matmul_dtype)

    # ---- attention over ALL heads in this grid step (static head loop);
    #      per-head context goes straight into a (tq, D) f32 VMEM scratch ----
    # TODO(synk): for hd < 128 the per-head lane slices are masked and underfill
    #   the MXU; production configs should use hd % 128 == 0 (or an Lk-tiled
    #   flash-style variant with a head-major KV layout for very long contexts).
    for h in range(num_heads):
        sl = slice(h * hd, (h + 1) * hd)
        qh = q[:, sl].astype(matmul_dtype)                  # (tq, hd)
        kh = k[:, sl]                                       # (Lk, hd)
        vh = v[:, sl]                                       # (Lk, hd)
        # contract last dims of q and k: no explicit transpose of K
        s = jax.lax.dot_general(qh, kh, (((1,), (1,)), ((), ())),
                                preferred_element_type=jnp.float32)  # (tq, Lk)
        m = jnp.max(s, axis=-1, keepdims=True)
        p = jnp.exp(s - m)
        denom = jnp.sum(p, axis=-1, keepdims=True)
        p = p * pl.reciprocal(denom, approx=True)           # EUP, not VALU divide
        ctx_ref[:, sl] = jax.lax.dot_general(
            p.astype(matmul_dtype), vh, (((1,), (0,)), ((), ())),
            preferred_element_type=jnp.float32)             # (tq, hd)

    ctx = ctx_ref[...]                                      # (tq, D) f32

    # ---- out-projection + residual + LN1 (fused, stays in VMEM) ----
    attn_out = jnp.dot(ctx.astype(matmul_dtype), wo_ref[...].astype(matmul_dtype),
                       preferred_element_type=jnp.float32)
    attn_out = attn_out + bo_ref[...].astype(jnp.float32)
    x = _layernorm_f32(x_in + attn_out, g1_ref[...], be1_ref[...], eps)

    # ---- MLP (both linears + ReLU) + residual + LN2 (fused) ----
    hid = jnp.dot(x.astype(matmul_dtype), w1_ref[...].astype(matmul_dtype),
                  preferred_element_type=jnp.float32) + bb1_ref[...].astype(jnp.float32)
    hid = jnp.maximum(hid, 0.0)
    mlp = jnp.dot(hid.astype(matmul_dtype), w2_ref[...].astype(matmul_dtype),
                  preferred_element_type=jnp.float32) + bb2_ref[...].astype(jnp.float32)
    y = _layernorm_f32(x + mlp, g2_ref[...], be2_ref[...], eps)

    o_ref[0] = y.astype(o_ref.dtype)


def cross_attention_block(query, context, params, num_heads, *,
                          q_tile=None, matmul_dtype=jnp.bfloat16, eps=1e-5):
    """Eval-mode forward of CrossAttentionBlock(query, context)."""
    B, Lq, D = query.shape
    Lk = context.shape[1]
    hd = D // num_heads
    assert hd * num_heads == D
    hidden = params["mlp_w1"].shape[1]

    vmem_limit = _vmem_limit_bytes()
    if q_tile is None:
        # bigger row tiles on the 128 MiB-VMEM parts (v5e/v6e), 256 otherwise
        q_tile = 512 if vmem_limit >= 96 * 1024 * 1024 else 256
    align = 16 if matmul_dtype == jnp.bfloat16 else 8

    # --- cast weights ONCE at the call boundary: half the weight DMA bytes
    #     and VMEM, MXU-native bf16 operands. Biases / LN params stay f32. ---
    wq = params["wq"].astype(matmul_dtype)
    wo = params["wo"].astype(matmul_dtype)
    w1 = params["mlp_w1"].astype(matmul_dtype)
    w2 = params["mlp_w2"].astype(matmul_dtype)
    wkv = jnp.concatenate([params["wk"], params["wv"]], axis=1).astype(matmul_dtype)
    bkv = jnp.concatenate([params["bk"], params["bv"]], axis=0).astype(jnp.float32)

    # --- fused K|V projection: one matmul, one HBM round trip of context;
    #     KV is emitted in matmul_dtype so the attention kernel streams half
    #     the bytes and holds half the VMEM per KV block. ---
    kv = linear(context.reshape(B * Lk, D), wkv, bkv,
                matmul_dtype=matmul_dtype, out_dtype=matmul_dtype,
                row_tile=q_tile, align=align,
                vmem_limit=vmem_limit).reshape(B, Lk, 2 * D)

    # --- query row tiling (all heads per step; grid over batch x q-tiles) ---
    tq = _pick_row_tile(Lq, q_tile, align)
    Lq_pad = _round_up(Lq, tq)
    qp = query if Lq_pad == Lq else jnp.pad(
        query, ((0, 0), (0, Lq_pad - Lq), (0, 0)))

    kernel = functools.partial(
        _cross_block_kernel, num_heads=num_heads,
        scale=1.0 / math.sqrt(hd), eps=eps, matmul_dtype=matmul_dtype)

    _w = lambda shape: _invariant_spec(shape, 2)

    # TODO(synk): for contexts where the (Lk, 2D) block no longer fits the
    #   VMEM budget, switch to an Lk-tiled flash-style online-softmax variant
    #   (kv grid axis marked "arbitrary", running m/l/acc scratch).
    out = pl.pallas_call(
        kernel,
        out_shape=jax.ShapeDtypeStruct((B, Lq_pad, D), query.dtype),
        grid=(B, Lq_pad // tq),
        in_specs=[
            pl.BlockSpec((1, tq, D), lambda b, i: (b, i, 0)),       # query tile
            pl.BlockSpec((1, Lk, 2 * D), lambda b, i: (b, 0, 0)),   # K|V of batch b
            _w((D, D)), _w((1, D)),                                 # Wq, bq
            _w((D, D)), _w((1, D)),                                 # Wo, bo
            _w((1, D)), _w((1, D)),                                 # LN1 gamma, beta
            _w((D, hidden)), _w((1, hidden)),                       # W1, b1
            _w((hidden, D)), _w((1, D)),                            # W2, b2
            _w((1, D)), _w((1, D)),                                 # LN2 gamma, beta
        ],
        out_specs=pl.BlockSpec((1, tq, D), lambda b, i: (b, i, 0)),
        scratch_shapes=[pltpu.VMEM((tq, D), jnp.float32)],          # per-head ctx
        compiler_params=pltpu.CompilerParams(
            dimension_semantics=("parallel", "parallel"),
            vmem_limit_bytes=vmem_limit),
    )(qp, kv,
      wq, params["bq"].astype(jnp.float32).reshape(1, D),
      wo, params["bo"].astype(jnp.float32).reshape(1, D),
      params["ln1_g"].astype(jnp.float32).reshape(1, D),
      params["ln1_b"].astype(jnp.float32).reshape(1, D),
      w1, params["mlp_b1"].astype(jnp.float32).reshape(1, hidden),
      w2, params["mlp_b2"].astype(jnp.float32).reshape(1, D),
      params["ln2_g"].astype(jnp.float32).reshape(1, D),
      params["ln2_b"].astype(jnp.float32).reshape(1, D))

    return out if Lq_pad == Lq else out[:, :Lq]


# ----------------------------------------------------------------------------
# Pure-JAX reference (mirrors the PyTorch module, eval mode) for a self-check
# ----------------------------------------------------------------------------

def _reference(query, context, params, num_heads, eps=1e-5):
    B, Lq, D = query.shape
    Lk = context.shape[1]
    hd = D // num_heads

    def lin(x, w, b):
        return x @ w + b

    def ln(x, g, b):
        mu = x.mean(-1, keepdims=True)
        var = ((x - mu) ** 2).mean(-1, keepdims=True)
        return (x - mu) * jax.lax.rsqrt(var + eps) * g + b

    q = lin(query, params["wq"], params["bq"]).reshape(B, Lq, num_heads, hd).transpose(0, 2, 1, 3)
    k = lin(context, params["wk"], params["bk"]).reshape(B, Lk, num_heads, hd).transpose(0, 2, 1, 3)
    v = lin(context, params["wv"], params["bv"]).reshape(B, Lk, num_heads, hd).transpose(0, 2, 1, 3)
    s = jnp.einsum('bhqd,bhkd->bhqk', q, k) / math.sqrt(hd)
    p = jax.nn.softmax(s, axis=-1)
    ctx = jnp.einsum('bhqk,bhkd->bhqd', p, v).transpose(0, 2, 1, 3).reshape(B, Lq, D)
    attn_out = lin(ctx, params["wo"], params["bo"])
    x = ln(query + attn_out, params["ln1_g"], params["ln1_b"])
    h = jnp.maximum(lin(x, params["mlp_w1"], params["mlp_b1"]), 0.0)
    mlp = lin(h, params["mlp_w2"], params["mlp_b2"])
    return ln(x + mlp, params["ln2_g"], params["ln2_b"])


# ----------------------------------------------------------------------------

if __name__ == "__main__":
    B, Lq, Lk, D = 2, 8, 16, 32
    num_heads = 4
    mlp_ratio = 4.0
    hidden = int(mlp_ratio * D)

    key = jax.random.PRNGKey(0)
    keys = jax.random.split(key, 16)

    def w(i, shape, scale=0.05):
        return jax.random.normal(keys[i], shape, jnp.float32) * scale

    params = dict(
        wq=w(0, (D, D)), bq=w(1, (D,)),
        wk=w(2, (D, D)), bk=w(3, (D,)),
        wv=w(4, (D, D)), bv=w(5, (D,)),
        wo=w(6, (D, D)), bo=w(7, (D,)),
        ln1_g=jnp.ones((D,), jnp.float32), ln1_b=jnp.zeros((D,), jnp.float32),
        mlp_w1=w(8, (D, hidden)), mlp_b1=w(9, (hidden,)),
        mlp_w2=w(10, (hidden, D)), mlp_b2=w(11, (D,)),
        ln2_g=jnp.ones((D,), jnp.float32), ln2_b=jnp.zeros((D,), jnp.float32),
    )
    query = jax.random.normal(keys[12], (B, Lq, D), jnp.float32)
    context = jax.random.normal(keys[13], (B, Lk, D), jnp.float32)

    ref = _reference(query, context, params, num_heads)

    # default path: bf16 matmul operands, f32 accumulation / statistics
    out_bf16 = jax.block_until_ready(
        cross_attention_block(query, context, params, num_heads))
    assert out_bf16.shape == (B, Lq, D)
    assert bool(jnp.all(jnp.isfinite(out_bf16)))
    err_bf16 = float(jnp.max(jnp.abs(out_bf16 - ref)))
    assert err_bf16 < 5e-2, f"bf16 path: max abs err too large: {err_bf16}"

    # f32 path for a tighter numerical check
    out_f32 = jax.block_until_ready(
        cross_attention_block(query, context, params, num_heads,
                              matmul_dtype=jnp.float32))
    err_f32 = float(jnp.max(jnp.abs(out_f32 - ref)))
    assert err_f32 < 2e-2, f"f32 path: max abs err too large: {err_f32}"

    print("KERNEL_OK")
</pallas_src>

<mosaic_0001>
module attributes {stable_mosaic.version = 11 : i64} {
  func.func @_linear_kernel(%arg0: i32, %arg1: memref<32x32xf32, #tpu.memory_space<vmem>>, %arg2: memref<32x64xbf16, #tpu.memory_space<vmem>>, %arg3: memref<1x64xf32, #tpu.memory_space<vmem>>, %arg4: memref<32x64xbf16, #tpu.memory_space<vmem>>) attributes {dimension_semantics = [#tpu.dimension_semantics<parallel>], iteration_bounds = array<i64: 1>, scalar_prefetch = 0 : i64, scratch_operands = 0 : i64, tpu.core_type = #tpu.core_type<tc>, window_params = [{transform_indices = @transform_0, window_bounds = array<i64: 32, 32>}, {pipeline_mode = #tpu.pipeline_mode<synchronous>, transform_indices = @transform_1, window_bounds = array<i64: 32, 64>}, {pipeline_mode = #tpu.pipeline_mode<synchronous>, transform_indices = @transform_2, window_bounds = array<i64: 1, 64>}, {transform_indices = @transform_3, window_bounds = array<i64: 32, 64>}]} {
    %c0 = arith.constant 0 : index
    %c0_0 = arith.constant 0 : index
    %0 = vector.load %arg1[%c0, %c0_0] : memref<32x32xf32, #tpu.memory_space<vmem>>, vector<32x32xf32>
    %1 = arith.truncf %0 : vector<32x32xf32> to vector<32x32xbf16>
    %c0_1 = arith.constant 0 : index
    %c0_2 = arith.constant 0 : index
    %2 = vector.load %arg2[%c0_1, %c0_2] : memref<32x64xbf16, #tpu.memory_space<vmem>>, vector<32x64xbf16>
    %cst = arith.constant dense<0.000000e+00> : vector<32x64xf32>
    %3 = tpu.matmul %1, %2, %cst {dimension_numbers = #tpu.dot_dimension_numbers<[1], [0], [0], [1], [0, 0, 1, 1], [], []>} : vector<32x32xbf16>, vector<32x64xbf16>, vector<32x64xf32> -> vector<32x64xf32>
    %c0_3 = arith.constant 0 : index
    %c0_4 = arith.constant 0 : index
    %4 = vector.load %arg3[%c0_3, %c0_4] : memref<1x64xf32, #tpu.memory_space<vmem>>, vector<1x64xf32>
    %5 = vector.broadcast %4 : vector<1x64xf32> to vector<32x64xf32>
    %6 = arith.addf %3, %5 : vector<32x64xf32>
    %7 = arith.truncf %6 : vector<32x64xf32> to vector<32x64xbf16>
    %c0_5 = arith.constant 0 : index
    %c0_6 = arith.constant 0 : index
    %8 = vector.load %arg4[%c0_5, %c0_6] : memref<32x64xbf16, #tpu.memory_space<vmem>>, vector<32x64xbf16>
    tpu.vector_store %arg4[%c0_5, %c0_6], %7 {strides = array<i32>} : memref<32x64xbf16, #tpu.memory_space<vmem>>, vector<32x64xbf16>,
    return
  }
  func.func @transform_0(%arg0: i32) -> (i32, i32) {
    %c0_i32 = arith.constant 0 : i32
    %c0_i32_0 = arith.constant 0 : i32
    return %arg0, %c0_i32 : i32, i32
  }
  func.func @transform_1(%arg0: i32) -> (i32, i32) {
    %c0_i32 = arith.constant 0 : i32
    %c0_i32_0 = arith.constant 0 : i32
    %c0_i32_1 = arith.constant 0 : i32
    return %c0_i32, %c0_i32_0 : i32, i32
  }
  func.func @transform_2(%arg0: i32) -> (i32, i32) {
    %c0_i32 = arith.constant 0 : i32
    %c0_i32_0 = arith.constant 0 : i32
    %c0_i32_1 = arith.constant 0 : i32
    return %c0_i32, %c0_i32_0 : i32, i32
  }
  func.func @transform_3(%arg0: i32) -> (i32, i32) {
    %c0_i32 = arith.constant 0 : i32
    %c0_i32_0 = arith.constant 0 : i32
    return %arg0, %c0_i32 : i32, i32
  }
}

</mosaic_0001>

<llo_original>
// kernel: tpu_custom_call.1
$region0: #{tpu_custom_call.1}
  #allocation0 [shape = 'u32[]', space=smem, size = 0x4, offset = 0x4, fixed_abs, tag = 'smem constant byte address 0x4 - core index']
  #allocation1 [shape = 'u32[72,128]{1,0:T(1,128)}', space=vmem, size = 0x9000, scoped, tag = 'internal scratch']
  %s0 = inlined_call_operand.hbm [shape: f32[32,32], index: 0, kind: input, shape index: {}]
  %s1 = inlined_call_operand.hbm [shape: bf16[32,64], index: 1, kind: input, shape index: {}]
  %s2 = inlined_call_operand.vmem [shape: f32[1,64], index: 2, kind: input, shape index: {}]
  %s3 = inlined_call_operand.hbm [shape: bf16[32,64], index: 3, kind: output, shape index: {}]
  %s4 = sld [smem:[#allocation0]]
  $region30: #{tpu_custom_call.1} parent=0
    _
  %s6 = ssub.s32 1, %s4
  %s7 = scalar_select 0, %s6, %s4
  $region1: #{tpu_custom_call.1} parent=0
    #allocation2 [shape = 'u8[16384]{0}', space=vmem, size = 0x4000, scoped, tag = 'input window, operand 0, single buffered']
    #allocation3 [shape = 's32[1]{0}', space=sflag, size = 0x4, scoped, tag = 'scoped memory for tpu_custom_call.1']
    #allocation4 [shape = 's32[1]{0}', space=sflag, size = 0x4, scoped, tag = 'scoped memory for tpu_custom_call.1']
    #allocation5 [shape = 'u8[8192]{0}', space=vmem, size = 0x2000, scoped, tag = 'input window, operand 1, single buffered']
    #allocation6 [shape = 's32[1]{0}', space=sflag, size = 0x4, scoped, tag = 'scoped memory for tpu_custom_call.1']
    #allocation7 [shape = 'u8[8192]{0}', space=vmem, size = 0x2000, scoped, tag = 'output window, operand 0, single buffered']
    %8 = vsyncpa [#allocation3], 0
    %9 = vsyncpa [#allocation6], 0
    %10 = vsyncpa [#allocation4], 0
    // Predicated region
    $region2: #{tpu_custom_call.1} parent=1 // pred_check
      _
    $region3: #{tpu_custom_call.1} parent=1 // pred_check_branch
      %12 = sbr.rel (0) target = $region5
    $region4: #{tpu_custom_call.1} parent=1 // pred_region
      %14 = vsyncadd [#allocation3], 0
      %s15 = sshll.u32 %s0, 4
      %s16 = int_to_ptr.hbm [resolvable:$true] %s15
      %s17 = sshll.u32 [#allocation2], 4
      %s18 = int_to_ptr.vmem [resolvable:$true] %s17
      %23 = dma.hbm_to_vmem [thread:$0]  %s16, 512, %s18, [#allocation3], 128, 128, 8
    $region5: #{tpu_custom_call.1} parent=1 // pred_fallthru
      _
    // Predicated region
    $region6: #{tpu_custom_call.1} parent=1 // pred_check
      _
    $region7: #{tpu_custom_call.1} parent=1 // pred_check_branch
      %25 = sbr.rel (0) target = $region9
    $region8: #{tpu_custom_call.1} parent=1 // pred_region
      %27 = vsyncadd [#allocation6], 0
      %s28 = sshll.u32 %s1, 4
      %s29 = int_to_ptr.hbm [resolvable:$true] %s28
      %s30 = sshll.u32 [#allocation5], 4
      %s31 = int_to_ptr.vmem [resolvable:$true] %s30
      %36 = dma.hbm_to_vmem [thread:$0]  %s29, 256, %s31, [#allocation6], 64, 64, 4
    $region9: #{tpu_custom_call.1} parent=1 // pred_fallthru
      _
    // Predicated region
    $region10: #{tpu_custom_call.1} parent=1 // pred_check
      _
    $region11: #{tpu_custom_call.1} parent=1 // pred_check_branch
      %38 = sbr.rel (0) target = $region13
    $region12: #{tpu_custom_call.1} parent=1 // pred_region
      _
    $region13: #{tpu_custom_call.1} parent=1 // pred_fallthru
      _
    // Predicated region
    $region14: #{tpu_custom_call.1} parent=1 // pred_check
      _
    $region15: #{tpu_custom_call.1} parent=1 // pred_check_branch
      %40 = sbr.rel (0) target = $region17
    $region16: #{tpu_custom_call.1} parent=1 // pred_region
      %42 = dma.done [#allocation3], 512
    $region17: #{tpu_custom_call.1} parent=1 // pred_fallthru
      _
    // Predicated region
    $region18: #{tpu_custom_call.1} parent=1 // pred_check
      _
    $region19: #{tpu_custom_call.1} parent=1 // pred_check_branch
      %44 = sbr.rel (0) target = $region21
    $region20: #{tpu_custom_call.1} parent=1 // pred_region
      %46 = dma.done [#allocation6], 256
    $region21: #{tpu_custom_call.1} parent=1 // pred_fallthru
      _
    %v48 = vld [vmem:[#allocation2] sm:$0xff]
    %v49 = vld [vmem:[#allocation2 + $0x8] sm:$0xff]
    %v50 = vld [vmem:[#allocation2 + $0x10] sm:$0xff]
    %v51 = vld [vmem:[#allocation2 + $0x18] sm:$0xff]
    %v52 = vpack.c.bf16 %v49, %v48
    %v53 = vpack.c.bf16 %v51, %v50
    %v54 = vld [vmem:[#allocation5] sm:$0xf]
    %v55 = vld [vmem:[#allocation5 + $0x4] sm:$0xf]
    %v56 = vld [vmem:[#allocation5 + $0x8] sm:$0xf]
    %v57 = vld [vmem:[#allocation5 + $0xc] sm:$0xf]
    %v58 = vld [vmem:[%s2] sm:$0x1]
    %v60 = vperm.slane %v58, 0
    %v66 = vunpack.c.l.b16 %v54
    %v67 = vunpack.c.l.b16 %v55
    %v68 = vunpack.c.l.b16 %v56
    %v69 = vunpack.c.l.b16 %v57
    %v70 = vpack.c.b16 %v67, %v66
    %v71 = vpack.c.b16 %v69, %v68
    %vm74 = vcmask 261120
    %v76 = vsel %vm74, %v52, 0
    %v79 = vsel %vm74, %v53, 0
    %81 = vmatpush.bf16.msra.mxu0 0
    %82 = vmatpush.bf16.msra.mxu0 0
    %83 = vmatpush.bf16.msra.mxu0 0
    %84 = vmatpush.bf16.msra.mxu0 0
    %85 = vmatpush.bf16.msra.mxu0 0
    %86 = vmatpush.bf16.msra.mxu0 0
    %87 = vmatpush.bf16.msra.mxu0 %v71
    %88 = vmatpush.bf16.msra.mxu0 %v70
    %89 = vmatmul.bf16.gmra.mxu0 %v76
    %v90 = vpop.f32.mrf.mxu0
    %v91 = vadd.f32 %v60, %v90
    %v92 = vpop.f32.mrf.mxu0
    %v93 = vadd.f32 %v60, %v92
    %94 = vmatmul.bf16.gmra.mxu0 %v79
    %v95 = vpop.f32.mrf.mxu0
    %v96 = vadd.f32 %v60, %v95
    %v97 = vpop.f32.mrf.mxu0
    %v98 = vadd.f32 %v60, %v97
    %99 = vdwg.mxu0
    %v100 = vpack.c.bf16 %v91, %v91
    %v101 = vpack.c.bf16 %v93, %v93
    %v102 = vpack.c.bf16 %v96, %v96
    %v103 = vpack.c.bf16 %v98, %v98
    %vm104 = vcmask 519168
    %105 = vst.msk [vmem:[#allocation7] sm:$0xf] %vm104, %v100
    %106 = vst.msk [vmem:[#allocation7 + $0x4] sm:$0xf] %vm104, %v101
    %107 = vst.msk [vmem:[#allocation7 + $0x8] sm:$0xf] %vm104, %v102
    %108 = vst.msk [vmem:[#allocation7 + $0xc] sm:$0xf] %vm104, %v103
    // Predicated region
    $region22: #{tpu_custom_call.1} parent=1 // pred_check
      _
    $region23: #{tpu_custom_call.1} parent=1 // pred_check_branch
      %110 = sbr.rel (0) target = $region25
    $region24: #{tpu_custom_call.1} parent=1 // pred_region
      %112 = vsyncadd [#allocation4], 0
      %s113 = sshll.u32 [#allocation7], 4
      %s114 = int_to_ptr.vmem [resolvable:$true] %s113
      %s115 = sshll.u32 %s3, 4
      %s116 = int_to_ptr.hbm [resolvable:$true] %s115
      %121 = dma.vmem_to_hbm [thread:$0]  %s114, 256, %s116, [#allocation4], 64, 64, 4
    $region25: #{tpu_custom_call.1} parent=1 // pred_fallthru
      _
    // Predicated region
    $region26: #{tpu_custom_call.1} parent=1 // pred_check
      _
    $region27: #{tpu_custom_call.1} parent=1 // pred_check_branch
      %123 = sbr.rel (0) target = $region29
    $region28: #{tpu_custom_call.1} parent=1 // pred_region
      %125 = dma.done [#allocation4], 256
    $region29: #{tpu_custom_call.1} parent=1 // pred_fallthru
      _
    %126 = vsyncpa [#allocation3], 1
    %127 = vsyncpa [#allocation6], 1
    %128 = vsyncpa [#allocation4], 1

</llo_original>
